<compile_context>
chip_gen: v7x
topology: tpu7x:2x2x1
jax: 0.10.0
libtpu: 0.0.40
codegen_flags: <defaults>
</compile_context>

<pallas_src>
import functools

import jax
import jax.numpy as jnp
from jax import lax
from jax.experimental import pallas as pl
from jax.experimental.pallas import tpu as pltpu

EPS = 1e-6          # torch.nn.PairwiseDistance default eps (added to the difference)
NUM_NEG = 44        # 44 negative proxies per sample
C_USED = 45         # proxy rows 0..44 participate in the negative set
C_PAD = 128         # lane-padded number of proxy columns
TB_MAX = 2048       # row-tile cap (bf16 features -> ~6-7 MiB total VMEM footprint)


def _round_up(x, m):
    return ((x + m - 1) // m) * m


def nca_loss_kernel(feat_ref, proxyT_ref, sqg_ref, label_ref, out_ref, *, batch_size):
    f16 = feat_ref[...]                                  # (TB, D) bf16
    g16 = proxyT_ref[...]                                # (D, 128) bf16, eps already folded in
    sq_g = sqg_ref[...]                                  # (1, 128) f32, ||proxy - eps||^2

    # Squared feature norms on the VPU/XLU path (keep the MXU for the single big matmul).
    f32 = f16.astype(jnp.float32)
    sq_f = jnp.sum(f32 * f32, axis=1, keepdims=True)     # (TB, 1) f32

    # Distances to all proxies via the matmul expansion; bf16 MXU, f32 accumulation.
    cross = jnp.dot(f16, g16, preferred_element_type=jnp.float32)    # (TB, 128) f32
    d = jnp.sqrt(jnp.maximum(sq_f - 2.0 * cross + sq_g, 0.0))        # (TB, 128) f32

    label = label_ref[...]                               # (TB, 1) int32 (garbage in OOB rows)
    tb = d.shape[0]
    col = lax.broadcasted_iota(jnp.int32, (tb, C_PAD), 1)

    # Row-validity mask for the ragged last tile (no feature padding in HBM).
    row = pl.program_id(0) * tb + lax.broadcasted_iota(jnp.int32, (tb, 1), 0)
    valid = row < batch_size                             # (TB, 1) bool

    # Positive distance: one-hot lane select of column == label.
    d_pos = jnp.sum(jnp.where(col == label, d, 0.0), axis=1, keepdims=True)   # (TB, 1)

    # Negatives: columns 0..44, excluding min(label, 44).
    excl = jnp.minimum(label, NUM_NEG)
    neg_mask = (col < C_USED) & (col != excl)
    denom = jnp.sum(jnp.where(neg_mask, jnp.exp(-d), 0.0),
                    axis=1, keepdims=True)               # (TB, 1)

    # -log(exp(-d_pos)/denom) == d_pos + log(denom); select-zero invalid (OOB) rows.
    loss = jnp.where(valid, d_pos + jnp.log(denom), 0.0)             # (TB, 1)
    tile_sum = jnp.sum(loss)                             # scalar partial sum for this tile
    out_ref[...] = jnp.full((1, 1, C_PAD), tile_sum, jnp.float32)    # lane-dense store


def prepare_proxy(proxy):
    """Proxy-derived constants; cacheable across calls while `proxy` is unchanged."""
    proxy = proxy.astype(jnp.float32)
    C, D = proxy.shape
    assert C_USED <= C <= C_PAD, "kernel supports 45 <= num_proxies <= 128"
    g = proxy - EPS                                      # fold pdist eps once
    proxyT = jnp.zeros((D, C_PAD), jnp.float32).at[:, :C].set(g.T).astype(jnp.bfloat16)
    sq_g = jnp.zeros((1, C_PAD), jnp.float32).at[0, :C].set(jnp.sum(g * g, axis=1))
    return proxyT, sq_g


def nca_loss(feature, label, proxy):
    B, D = feature.shape
    label = label.astype(jnp.int32).reshape(B, 1)
    feat16 = feature.astype(jnp.bfloat16)                # bf16 MXU input, halves HBM bytes
    proxyT, sq_g = prepare_proxy(proxy)

    # Pick the row tile from the tile count so dead-row padding stays tiny, and force
    # at least two grid tiles (when B permits) so both v7x TensorCores get work.
    num_tiles = pl.cdiv(B, TB_MAX)
    if num_tiles < 2 and B > 8:
        num_tiles = 2
    TB = _round_up(pl.cdiv(B, num_tiles), 8)
    num_tiles = pl.cdiv(B, TB)

    kernel = functools.partial(nca_loss_kernel, batch_size=B)
    partials = pl.pallas_call(
        kernel,
        out_shape=jax.ShapeDtypeStruct((num_tiles, 1, C_PAD), jnp.float32),
        grid=(num_tiles,),
        in_specs=[
            pl.BlockSpec((TB, D), lambda i: (i, 0)),          # feature tile (bf16, streamed)
            pl.BlockSpec((D, C_PAD), lambda i: (0, 0)),       # proxyT (bf16, VMEM-resident)
            pl.BlockSpec((1, C_PAD), lambda i: (0, 0)),       # sq_g   (f32,  VMEM-resident)
            pl.BlockSpec((TB, 1), lambda i: (i, 0)),          # labels tile
        ],
        out_specs=pl.BlockSpec((1, 1, C_PAD), lambda i: (i, 0, 0)),
        compiler_params=pltpu.CompilerParams(
            dimension_semantics=("parallel",)),
    )(feat16, proxyT, sq_g, label)

    return jnp.sum(partials[:, 0, 0])


def nca_loss_ref(feature, label, proxy):
    """Pure-JAX f32 reference mirroring the PyTorch loop exactly."""
    feature = feature.astype(jnp.float32)
    proxy = proxy.astype(jnp.float32)
    pos = proxy[label]
    d_pos = jnp.sqrt(jnp.sum((feature - pos + EPS) ** 2, axis=1))
    num = jnp.exp(-d_pos)
    denom = jnp.zeros_like(num)
    idx = jnp.zeros(label.shape, jnp.int32)
    for _ in range(NUM_NEG):
        idx = jnp.where(idx == label, idx + 1, idx)
        neg = proxy[idx]
        dn = jnp.sqrt(jnp.sum((feature - neg + EPS) ** 2, axis=1))
        denom = denom + jnp.exp(-dn)
        idx = idx + 1
    return jnp.sum(-jnp.log(num / denom))


if __name__ == "__main__":
    key = jax.random.PRNGKey(0)
    kf, kp, kl = jax.random.split(key, 3)

    # D=512 is what the module hard-codes; C >= 45 required; B=20 exercises the
    # two-tile parallel grid and the ragged (masked) last tile.
    B, D, C = 20, 512, 50
    feature = jax.random.normal(kf, (B, D), jnp.float32)
    proxy = jax.random.normal(kp, (C, D), jnp.float32)
    label = jax.random.randint(kl, (B,), 0, C, jnp.int32)

    loss = jax.block_until_ready(nca_loss(feature, label, proxy))
    ref = jax.block_until_ready(nca_loss_ref(feature, label, proxy))

    assert jnp.isfinite(loss), "non-finite loss"
    # Tolerance accounts for the bf16 MXU cross term (f32 reference throughout).
    assert jnp.allclose(loss, ref, rtol=5e-3, atol=1e-1), (loss, ref)
    print("KERNEL_OK")
</pallas_src>

<mosaic_0001>
module attributes {stable_mosaic.version = 11 : i64} {
  func.func @nca_loss_kernel(%arg0: i32, %arg1: memref<16x512xbf16, #tpu.memory_space<vmem>>, %arg2: memref<512x128xbf16, #tpu.memory_space<vmem>>, %arg3: memref<1x128xf32, #tpu.memory_space<vmem>>, %arg4: memref<16x1xi32, #tpu.memory_space<vmem>>, %arg5: memref<1x1x128xf32, #tpu.memory_space<vmem>>) attributes {dimension_semantics = [#tpu.dimension_semantics<parallel>], iteration_bounds = array<i64: 2>, scalar_prefetch = 0 : i64, scratch_operands = 0 : i64, tpu.core_type = #tpu.core_type<tc>, window_params = [{transform_indices = @transform_0, window_bounds = array<i64: 16, 512>}, {pipeline_mode = #tpu.pipeline_mode<synchronous>, transform_indices = @transform_1, window_bounds = array<i64: 512, 128>}, {pipeline_mode = #tpu.pipeline_mode<synchronous>, transform_indices = @transform_2, window_bounds = array<i64: 1, 128>}, {transform_indices = @transform_3, window_bounds = array<i64: 16, 1>}, {transform_indices = @transform_4, window_bounds = array<i64: 1, 1, 128>}]} {
    %c0 = arith.constant 0 : index
    %c0_0 = arith.constant 0 : index
    %0 = vector.load %arg1[%c0, %c0_0] : memref<16x512xbf16, #tpu.memory_space<vmem>>, vector<16x512xbf16>
    %c0_1 = arith.constant 0 : index
    %c0_2 = arith.constant 0 : index
    %1 = vector.load %arg2[%c0_1, %c0_2] : memref<512x128xbf16, #tpu.memory_space<vmem>>, vector<512x128xbf16>
    %c0_3 = arith.constant 0 : index
    %c0_4 = arith.constant 0 : index
    %2 = vector.load %arg3[%c0_3, %c0_4] : memref<1x128xf32, #tpu.memory_space<vmem>>, vector<1x128xf32>
    %3 = arith.extf %0 : vector<16x512xbf16> to vector<16x512xf32>
    %4 = arith.mulf %3, %3 : vector<16x512xf32>
    %cst = arith.constant dense<0.000000e+00> : vector<16xf32>
    %5 = vector.multi_reduction <add>, %4, %cst [1] : vector<16x512xf32> to vector<16xf32>
    %6 = vector.shape_cast %5 : vector<16xf32> to vector<16x1xf32>
    %cst_5 = arith.constant dense<0.000000e+00> : vector<16x128xf32>
    %7 = tpu.matmul %0, %1, %cst_5 {dimension_numbers = #tpu.dot_dimension_numbers<[1], [0], [0], [1], [0, 0, 1, 1], [], []>} : vector<16x512xbf16>, vector<512x128xbf16>, vector<16x128xf32> -> vector<16x128xf32>
    %cst_6 = arith.constant 2.000000e+00 : f32
    %8 = vector.broadcast %cst_6 : f32 to vector<16x128xf32>
    %9 = arith.mulf %8, %7 : vector<16x128xf32>
    %10 = vector.broadcast %6 : vector<16x1xf32> to vector<16x128xf32>
    %11 = arith.subf %10, %9 : vector<16x128xf32>
    %12 = vector.broadcast %2 : vector<1x128xf32> to vector<16x128xf32>
    %13 = arith.addf %11, %12 : vector<16x128xf32>
    %cst_7 = arith.constant 0.000000e+00 : f32
    %14 = vector.broadcast %cst_7 : f32 to vector<16x128xf32>
    %15 = arith.maximumf %13, %14 : vector<16x128xf32>
    %16 = math.sqrt %15 : vector<16x128xf32>
    %c0_8 = arith.constant 0 : index
    %c0_9 = arith.constant 0 : index
    %17 = vector.load %arg4[%c0_8, %c0_9] : memref<16x1xi32, #tpu.memory_space<vmem>>, vector<16x1xi32>
    %18 = tpu.iota {dimensions = array<i32: 1>} : vector<16x128xi32>
    %c16_i32 = arith.constant 16 : i32
    %19 = arith.muli %arg0, %c16_i32 : i32
    %20 = tpu.iota {dimensions = array<i32: 0>} : vector<16x1xi32>
    %21 = vector.broadcast %19 : i32 to vector<16x1xi32>
    %22 = arith.addi %21, %20 : vector<16x1xi32>
    %c20_i32 = arith.constant 20 : i32
    %23 = vector.broadcast %c20_i32 : i32 to vector<16x1xi32>
    %24 = arith.cmpi slt, %22, %23 : vector<16x1xi32>
    %25 = vector.broadcast %17 : vector<16x1xi32> to vector<16x128xi32>
    %26 = arith.cmpi eq, %18, %25 : vector<16x128xi32>
    %cst_10 = arith.constant 0.000000e+00 : f32
    %27 = vector.broadcast %cst_10 : f32 to vector<16x128xf32>
    %28 = arith.select %26, %16, %27 : vector<16x128xi1>, vector<16x128xf32>
    %cst_11 = arith.constant dense<0.000000e+00> : vector<16xf32>
    %29 = vector.multi_reduction <add>, %28, %cst_11 [1] : vector<16x128xf32> to vector<16xf32>
    %30 = vector.shape_cast %29 : vector<16xf32> to vector<16x1xf32>
    %c44_i32 = arith.constant 44 : i32
    %31 = vector.broadcast %c44_i32 : i32 to vector<16x1xi32>
    %32 = arith.minsi %17, %31 : vector<16x1xi32>
    %c45_i32 = arith.constant 45 : i32
    %33 = vector.broadcast %c45_i32 : i32 to vector<16x128xi32>
    %34 = arith.cmpi slt, %18, %33 : vector<16x128xi32>
    %35 = vector.broadcast %32 : vector<16x1xi32> to vector<16x128xi32>
    %36 = arith.cmpi ne, %18, %35 : vector<16x128xi32>
    %37 = arith.andi %34, %36 : vector<16x128xi1>
    %cst_12 = arith.constant 0.000000e+00 : f32
    %38 = vector.broadcast %cst_12 : f32 to vector<16x128xf32>
    %39 = arith.subf %38, %16 : vector<16x128xf32>
    %40 = math.exp %39 : vector<16x128xf32>
    %cst_13 = arith.constant 0.000000e+00 : f32
    %41 = vector.broadcast %cst_13 : f32 to vector<16x128xf32>
    %42 = arith.select %37, %40, %41 : vector<16x128xi1>, vector<16x128xf32>
    %cst_14 = arith.constant dense<0.000000e+00> : vector<16xf32>
    %43 = vector.multi_reduction <add>, %42, %cst_14 [1] : vector<16x128xf32> to vector<16xf32>
    %44 = vector.shape_cast %43 : vector<16xf32> to vector<16x1xf32>
    %45 = math.log %44 : vector<16x1xf32>
    %46 = arith.addf %30, %45 : vector<16x1xf32>
    %cst_15 = arith.constant 0.000000e+00 : f32
    %47 = vector.broadcast %cst_15 : f32 to vector<16x1xf32>
    %48 = arith.select %24, %46, %47 : vector<16x1xi1>, vector<16x1xf32>
    %49 = vector.shape_cast %48 : vector<16x1xf32> to vector<1x16x1xf32>
    %cst_16 = arith.constant dense<0.000000e+00> : vector<1xf32>
    %50 = vector.multi_reduction <add>, %49, %cst_16 [1, 2] : vector<1x16x1xf32> to vector<1xf32>
    %51 = vector.shape_cast %50 : vector<1xf32> to vector<1x1x1xf32>
    %52 = vector.extract %51[0, 0, 0] : f32 from vector<1x1x1xf32>
    %53 = vector.broadcast %52 : f32 to vector<1x1x128xf32>
    %c0_17 = arith.constant 0 : index
    %c0_18 = arith.constant 0 : index
    %c0_19 = arith.constant 0 : index
    %54 = vector.load %arg5[%c0_17, %c0_18, %c0_19] : memref<1x1x128xf32, #tpu.memory_space<vmem>>, vector<1x1x128xf32>
    tpu.vector_store %arg5[%c0_17, %c0_18, %c0_19], %53 {strides = array<i32>} : memref<1x1x128xf32, #tpu.memory_space<vmem>>, vector<1x1x128xf32>,
    return
  }
  func.func @transform_0(%arg0: i32) -> (i32, i32) {
    %c0_i32 = arith.constant 0 : i32
    %c0_i32_0 = arith.constant 0 : i32
    return %arg0, %c0_i32 : i32, i32
  }
  func.func @transform_1(%arg0: i32) -> (i32, i32) {
    %c0_i32 = arith.constant 0 : i32
    %c0_i32_0 = arith.constant 0 : i32
    %c0_i32_1 = arith.constant 0 : i32
    return %c0_i32, %c0_i32_0 : i32, i32
  }
  func.func @transform_2(%arg0: i32) -> (i32, i32) {
    %c0_i32 = arith.constant 0 : i32
    %c0_i32_0 = arith.constant 0 : i32
    %c0_i32_1 = arith.constant 0 : i32
    return %c0_i32, %c0_i32_0 : i32, i32
  }
  func.func @transform_3(%arg0: i32) -> (i32, i32) {
    %c0_i32 = arith.constant 0 : i32
    %c0_i32_0 = arith.constant 0 : i32
    return %arg0, %c0_i32 : i32, i32
  }
  func.func @transform_4(%arg0: i32) -> (i32, i32, i32) {
    %c0_i32 = arith.constant 0 : i32
    %c0_i32_0 = arith.constant 0 : i32
    %c0_i32_1 = arith.constant 0 : i32
    return %arg0, %c0_i32, %c0_i32_0 : i32, i32, i32
  }
}

</mosaic_0001>

<llo_original>
// kernel: tpu_custom_call.1
$region0: #{tpu_custom_call.1}
  #allocation0 [shape = 'u32[]', space=smem, size = 0x4, offset = 0x4, fixed_abs, tag = 'smem constant byte address 0x4 - core index']
  #allocation1 [shape = 'u32[144,128]{1,0:T(1,128)}', space=vmem, size = 0x12000, scoped, tag = 'internal scratch']
  %s0 = inlined_call_operand.hbm [shape: bf16[20,512], index: 0, kind: input, shape index: {}]
  %s1 = inlined_call_operand.hbm [shape: bf16[512,128], index: 1, kind: input, shape index: {}]
  %s2 = inlined_call_operand.vmem [shape: f32[1,128], index: 2, kind: input, shape index: {}]
  %s3 = inlined_call_operand.vmem [shape: s32[20,1], index: 3, kind: input, shape index: {}]
  %s4 = inlined_call_operand.hbm [shape: f32[2,1,128], index: 4, kind: output, shape index: {}]
  %s5 = sld [smem:[#allocation0]]
  $region57: #{tpu_custom_call.1} parent=0
    _
  %s7 = ssub.s32 1, %s5
  %s8 = scalar_select 0, %s7, %s5
  $region1: #{tpu_custom_call.1} parent=0
    #allocation2 [shape = 'u8[32768]{0}', space=vmem, size = 0x8000, scoped, tag = 'input window, operand 0']
    #allocation3 [shape = 's32[2]{0}', space=sflag, size = 0x8, scoped, tag = 'scoped memory for tpu_custom_call.1']
    #allocation4 [shape = 's32[2]{0}', space=sflag, size = 0x8, scoped, tag = 'scoped memory for tpu_custom_call.1']
    #allocation5 [shape = 'u8[131072]{0}', space=vmem, size = 0x20000, scoped, tag = 'input window, operand 1, single buffered']
    #allocation6 [shape = 's32[1]{0}', space=sflag, size = 0x4, scoped, tag = 'scoped memory for tpu_custom_call.1']
    #allocation7 [shape = 'u8[1024]{0}', space=vmem, size = 0x400, scoped, tag = 'output window, operand 0']
    %9 = vsyncpa [#allocation3], 0
    %s10 = scalar_lea.sflag [#allocation3], 1
    %11 = vsyncpa %s10, 0
    %12 = vsyncpa [#allocation6], 0
    %13 = vsyncpa [#allocation4], 0
    %s14 = scalar_lea.sflag [#allocation4], 1
    %15 = vsyncpa %s14, 0
    loop: start=0, step=1, limit=4
    $region2: #{tpu_custom_call.1} parent=1 // loop_pre_header
      _
    $region3: #{tpu_custom_call.1} parent=1 // loop_header
      %s17 = sphi 0, %s21
      %p18 = scmp.ge.s32.totalorder %s17, 4
      %s27 = sphi 0, %s29
      %s30 = sphi 0, %s27
      %s31 = sphi 0, %s30
      %s47 = sphi 0, %s31
      %s51 = sphi 0, %s51
      %s53 = sphi 0, %s51
      %s54 = sphi 0, %s53
      %s68 = sphi 0, %s54
      %s72 = sphi 0, %s72
      %s74 = sphi 0, %s72
      %s75 = sphi 0, %s74
      %s89 = sphi 0, %s75
      %s95 = sphi 0, %s97
      %s98 = sphi 0, %s95
      %s99 = sphi 0, %s98
      %s115 = sphi 0, %s99
      %s121 = sphi 0, %s123
      %s124 = sphi 0, %s121
      %s125 = sphi 0, %s124
      %s141 = sphi 0, %s125
    $region4: #{tpu_custom_call.1} parent=1 // loop_header_branch
      %20 = sbr.rel (%p18) target = $region8
    $region5: #{tpu_custom_call.1} parent=1 // loop_body
      %s22 = ssub.s32 %s17, 1
      %s23 = ssub.s32 %s17, 2
      %s24 = sadd.s32 %s17, 1
      %s25 = ssub.s32 %s17, %s24
      %p26 = scmp.eq.s32.totalorder %s25, 0
      %s28 = sadd.s32 %s27, 1
      %s29 = scalar_select %p26, %s27, %s28
      %p32 = pneg %p26
      %p33 = scmp.eq.s32.totalorder %s17, 1
      %p34 = por %p32, %p33
      %p35 = scmp.ne.s32.totalorder %s27, %s30
      %p36 = scmp.eq.s32.totalorder %s17, 0
      %p37 = por %p35, %p36
      %p38 = scmp.ne.s32.totalorder %s27, %s30
      %p39 = scmp.eq.s32.totalorder %s22, 1
      %p40 = por %p38, %p39
      %p41 = scmp.ne.s32.totalorder %s30, %s31
      %p42 = scmp.eq.s32.totalorder %s22, 0
      %p43 = por %p41, %p42
      %p44 = scmp.ne.s32.totalorder %s30, %s31
      %p45 = scmp.eq.s32.totalorder %s23, 1
      %p46 = por %p44, %p45
      %p48 = scmp.ne.s32.totalorder %s31, %s47
      %p49 = scmp.eq.s32.totalorder %s23, 0
      %p50 = por %p48, %p49
      %s52 = sadd.s32 %s51, 1
      %p55 = scmp.eq.s32.totalorder %s17, 1
      %p56 = scmp.ne.s32.totalorder %s51, %s53
      %p57 = scmp.eq.s32.totalorder %s17, 0
      %p58 = por %p56, %p57
      %p59 = scmp.ne.s32.totalorder %s51, %s53
      %p60 = scmp.eq.s32.totalorder %s22, 1
      %p61 = por %p59, %p60
      %p62 = scmp.ne.s32.totalorder %s53, %s54
      %p63 = scmp.eq.s32.totalorder %s22, 0
      %p64 = por %p62, %p63
      %p65 = scmp.ne.s32.totalorder %s53, %s54
      %p66 = scmp.eq.s32.totalorder %s23, 1
      %p67 = por %p65, %p66
      %p69 = scmp.ne.s32.totalorder %s54, %s68
      %p70 = scmp.eq.s32.totalorder %s23, 0
      %p71 = por %p69, %p70
      %s73 = sadd.s32 %s72, 1
      %p76 = scmp.eq.s32.totalorder %s17, 1
      %p77 = scmp.ne.s32.totalorder %s72, %s74
      %p78 = scmp.eq.s32.totalorder %s17, 0
      %p79 = por %p77, %p78
      %p80 = scmp.ne.s32.totalorder %s72, %s74
      %p81 = scmp.eq.s32.totalorder %s22, 1
      %p82 = por %p80, %p81
      %p83 = scmp.ne.s32.totalorder %s74, %s75
      %p84 = scmp.eq.s32.totalorder %s22, 0
      %p85 = por %p83, %p84
      %p86 = scmp.ne.s32.totalorder %s74, %s75
      %p87 = scmp.eq.s32.totalorder %s23, 1
      %p88 = por %p86, %p87
      %p90 = scmp.ne.s32.totalorder %s75, %s89
      %p91 = scmp.eq.s32.totalorder %s23, 0
      %p92 = por %p90, %p91
      %s93 = ssub.s32 %s17, %s24
      %p94 = scmp.eq.s32.totalorder %s93, 0
      %s96 = sadd.s32 %s95, 1
      %s97 = scalar_select %p94, %s95, %s96
      %p100 = pneg %p94
      %p101 = scmp.eq.s32.totalorder %s17, 1
      %p102 = por %p100, %p101
      %p103 = scmp.ne.s32.totalorder %s95, %s98
      %p104 = scmp.eq.s32.totalorder %s17, 0
      %p105 = por %p103, %p104
      %p106 = scmp.ne.s32.totalorder %s95, %s98
      %p107 = scmp.eq.s32.totalorder %s22, 1
      %p108 = por %p106, %p107
      %p109 = scmp.ne.s32.totalorder %s98, %s99
      %p110 = scmp.eq.s32.totalorder %s22, 0
      %p111 = por %p109, %p110
      %p112 = scmp.ne.s32.totalorder %s98, %s99
      %p113 = scmp.eq.s32.totalorder %s23, 1
      %p114 = por %p112, %p113
      %p116 = scmp.ne.s32.totalorder %s99, %s115
      %p117 = scmp.eq.s32.totalorder %s23, 0
      %p118 = por %p116, %p117
      %s119 = ssub.s32 %s17, %s24
      %p120 = scmp.eq.s32.totalorder %s119, 0
      %s122 = sadd.s32 %s121, 1
      %s123 = scalar_select %p120, %s121, %s122
      %p126 = pneg %p120
      %p127 = scmp.eq.s32.totalorder %s17, 1
      %p128 = por %p126, %p127
      %p129 = scmp.ne.s32.totalorder %s121, %s124
      %p130 = scmp.eq.s32.totalorder %s17, 0
      %p131 = por %p129, %p130
      %p132 = scmp.ne.s32.totalorder %s121, %s124
      %p133 = scmp.eq.s32.totalorder %s22, 1
      %p134 = por %p132, %p133
      %p135 = scmp.ne.s32.totalorder %s124, %s125
      %p136 = scmp.eq.s32.totalorder %s22, 0
      %p137 = por %p135, %p136
      %p138 = scmp.ne.s32.totalorder %s124, %s125
      %p139 = scmp.eq.s32.totalorder %s23, 1
      %p140 = por %p138, %p139
      %p142 = scmp.ne.s32.totalorder %s125, %s141
      %p143 = scmp.eq.s32.totalorder %s23, 0
      %p144 = por %p142, %p143
      %p145 = scmp.le.s32.totalorder 1, %s17
      %p146 = scmp.lt.s32.totalorder %s17, 3
      %p147 = pnand %p145, %p146
      %p148 = pneg %p147
      // Predicated region
      $region9: #{tpu_custom_call.1} parent=5 // pred_check
        _
      $region10: #{tpu_custom_call.1} parent=5 // pred_check_branch
        %150 = sbr.rel (%p147) target = $region12
      $region11: #{tpu_custom_call.1} parent=5 // pred_region
        %s151 = ssub.s32 %s17, 1
        // Predicated region
        $region13: #{tpu_custom_call.1} parent=11 // pred_check
          %p152 = pneg %p64
        $region14: #{tpu_custom_call.1} parent=11 // pred_check_branch
          %154 = sbr.rel (%p152) target = $region16
        $region15: #{tpu_custom_call.1} parent=11 // pred_region
          %s156 = ssub.s32 4096, 4096
          %157 = vsyncadd [#allocation6], %s156
          %s158 = sshll.u32 [#allocation5], 4
          %s159 = int_to_ptr.vmem [resolvable:$true] %s158
          %164 = dma.hbm_to_vmem [thread:$0]  %s1, 4096, %s159, [#allocation6], 64, 64, 4
        $region16: #{tpu_custom_call.1} parent=11 // pred_fallthru
          _
        // Predicated region
        $region17: #{tpu_custom_call.1} parent=11 // pred_check
          %p165 = pneg %p85
        $region18: #{tpu_custom_call.1} parent=11 // pred_check_branch
          %167 = sbr.rel (%p165) target = $region20
        $region19: #{tpu_custom_call.1} parent=11 // pred_region
          _
        $region20: #{tpu_custom_call.1} parent=11 // pred_fallthru
          _
      $region12: #{tpu_custom_call.1} parent=5 // pred_fallthru
        _
      %p168 = scmp.lt.s32.totalorder %s17, 2
      // Predicated region
      $region21: #{tpu_custom_call.1} parent=5 // pred_check
        %p169 = pneg %p168
      $region22: #{tpu_custom_call.1} parent=5 // pred_check_branch
        %171 = sbr.rel (%p169) target = $region24
      $region23: #{tpu_custom_call.1} parent=5 // pred_region
        // Predicated region
        $region25: #{tpu_custom_call.1} parent=23 // pred_check
          %p172 = pneg %p37
        $region26: #{tpu_custom_call.1} parent=23 // pred_check_branch
          %174 = sbr.rel (%p172) target = $region28
        $region27: #{tpu_custom_call.1} parent=23 // pred_region
          %s175 = sand.u32 %s27, 1
          %s176 = scalar_lea.sflag [#allocation3], %s175
          %s177 = sand.u32 %s27, 1
          %s178 = smul.addr %s177, 32
          %s179 = scalar_lea.vmem [#allocation2], %s178
          %s180 = smul.u32 2, %s17
          %s181 = ssub.s32 3, %s180
          %p182 = scmp.lt.s32.totalorder %s181, 2
          %s183 = scalar_select %p182, %s181, 2
          %s184 = smul.u32 64, %s183
          %s185 = smul.u32 %s184, 4
          %s187 = ssub.s32 512, %s185
          %188 = vsyncadd %s176, %s187
          %p189 = scmp.ne.s32.totalorder 0, %s185
          %s190 = smul.addr %s180, 4
          %s191 = smul.addr %s190, 64
          %s192 = scalar_lea.hbm %s0, %s191
          %s193 = smul.u32 16, %s183
          %s194 = sshll.u32 %s179, 4
          %s195 = int_to_ptr.vmem [resolvable:$true] %s194
          %s196 = sshll.u32 %s193, 4
          %200 = dma.hbm_to_vmem [thread:$0]  (%p189), %s192, %s196, %s195, %s176, 256, 256, 16
        $region28: #{tpu_custom_call.1} parent=23 // pred_fallthru
          _
        // Predicated region
        $region29: #{tpu_custom_call.1} parent=23 // pred_check
          %p201 = pneg %p105
        $region30: #{tpu_custom_call.1} parent=23 // pred_check_branch
          %203 = sbr.rel (%p201) target = $region32
        $region31: #{tpu_custom_call.1} parent=23 // pred_region
          %s204 = smul.u32 2, %s17
          %s205 = ssub.s32 3, %s204
          %p206 = scmp.lt.s32.totalorder %s205, 2
          %s207 = scalar_select %p206, %s205, 2
          %s208 = smul.u32 128, %s207
          %p209 = scmp.lt.s32.totalorder %s204, 2
          %s210 = scalar_select %p209, %s204, 2
          %s211 = smul.addr %s210, 8
          %s212 = scalar_lea.vmem %s3, %s211
          %s213 = smul.u32 2, %s17
          %s214 = ssub.s32 3, %s213
          %p215 = scmp.lt.s32.totalorder %s214, 2
          %s216 = scalar_select %p215, %s214, 2
          %s217 = smul.u32 128, %s216
        $region32: #{tpu_custom_call.1} parent=23 // pred_fallthru
          _
      $region24: #{tpu_custom_call.1} parent=5 // pred_fallthru
        _
      %p218 = scmp.le.s32.totalorder 1, %s17
      %p219 = scmp.lt.s32.totalorder %s17, 3
      %p220 = pnand %p218, %p219
      %p221 = pneg %p220
      // Predicated region
      $region33: #{tpu_custom_call.1} parent=5 // pred_check
        _
      $region34: #{tpu_custom_call.1} parent=5 // pred_check_branch
        %223 = sbr.rel (%p220) target = $region36
      $region35: #{tpu_custom_call.1} parent=5 // pred_region
        %s224 = ssub.s32 %s17, 1
        %s225 = sand.u32 %s30, 1
        %s226 = scalar_lea.sflag [#allocation3], %s225
        %s227 = sand.u32 %s30, 1
        %s228 = smul.addr %s227, 32
        %s229 = scalar_lea.vmem [#allocation2], %s228
        // Predicated region
        $region37: #{tpu_custom_call.1} parent=35 // pred_check
          %p230 = pneg %p43
        $region38: #{tpu_custom_call.1} parent=35 // pred_check_branch
          %232 = sbr.rel (%p230) target = $region40
        $region39: #{tpu_custom_call.1} parent=35 // pred_region
          %233 = dma.done %s226, 512
        $region40: #{tpu_custom_call.1} parent=35 // pred_fallthru
          _
        // Predicated region
        $region41: #{tpu_custom_call.1} parent=35 // pred_check
          %p234 = pneg %p64
        $region42: #{tpu_custom_call.1} parent=35 // pred_check_branch
          %236 = sbr.rel (%p234) target = $region44
        $region43: #{tpu_custom_call.1} parent=35 // pred_region
          %237 = dma.done [#allocation6], 4096
        $region44: #{tpu_custom_call.1} parent=35 // pred_fallthru
          _
        %s238 = sand.u32 %s30, 1
        %s239 = scalar_lea.sflag [#allocation3], %s238
        %s240 = sand.u32 %s30, 1
        %s241 = smul.addr %s240, 32
        %s242 = scalar_lea.vmem [#allocation2], %s241
        %p243 = pneg %p43
        %p244 = pneg %p40
        %p245 = pneg %p64
        %p246 = pneg %p61
        %p247 = pneg %p85
        %p248 = pneg %p82
        %s249 = smul.u32 2, %s22
        %s250 = ssub.s32 3, %s249
        %p251 = scmp.lt.s32.totalorder %s250, 2
        %s252 = scalar_select %p251, %s250, 2
        %s253 = smul.u32 128, %s252
        %p254 = scmp.lt.s32.totalorder %s249, 2
        %s255 = scalar_select %p254, %s249, 2
        %s256 = smul.addr %s255, 8
        %s257 = scalar_lea.vmem %s3, %s256
        %p258 = pneg %p111
        %p259 = pneg %p108
        %p260 = pneg %p137
        %p261 = pneg %p134
        %s262 = sand.u32 %s124, 1
        %s263 = scalar_lea.sflag [#allocation4], %s262
        %s264 = sand.u32 %s124, 1
        %s265 = scalar_lea.vmem [#allocation7], %s264
        %s266 = smul.u32 2, %s22
        %s267 = ssub.s32 3, %s266
        %p268 = scmp.lt.s32.totalorder %s267, 2
        %s269 = scalar_select %p268, %s267, 2
        %s270 = smul.u32 64, %s269
        %s271 = smul.u32 %s270, 4
        %s272 = smul.u32 2, %s22
        %s273 = ssub.s32 3, %s272
        %p274 = scmp.lt.s32.totalorder %s273, 2
        %s275 = scalar_select %p274, %s273, 2
        %s276 = smul.u32 128, %s275
        %p277 = scmp.lt.s32.totalorder %s272, 2
        %s278 = scalar_select %p277, %s272, 2
        %s279 = smul.addr %s278, 8
        %s280 = scalar_lea.vmem %s3, %s279
        %s281 = smul.u32 2, %s22
        %s282 = ssub.s32 3, %s281
        %p283 = scmp.lt.s32.totalorder %s282, 2
        %s284 = scalar_select %p283, %s282, 2
        %s285 = smul.u32 128, %s284
        %v287 = vld [vmem:[%s229] sm:$0xff]
        %v288 = vld [vmem:[%s229 + $0x8] sm:$0xff]
        %v289 = vld [vmem:[%s229 + $0x10] sm:$0xff]
        %v290 = vld [vmem:[%s229 + $0x18] sm:$0xff]
        %v291 = vld [vmem:[#allocation5] sm:$0xf]
        %v292 = vld [vmem:[#allocation5 + $0x4] sm:$0xf]
        %v293 = vld [vmem:[#allocation5 + $0x8] sm:$0xf]
        %v294 = vld [vmem:[#allocation5 + $0xc] sm:$0xf]
        %v295 = vld [vmem:[#allocation5 + $0x10] sm:$0xf]
        %v296 = vld [vmem:[#allocation5 + $0x14] sm:$0xf]
        %v297 = vld [vmem:[#allocation5 + $0x18] sm:$0xf]
        %v298 = vld [vmem:[#allocation5 + $0x1c] sm:$0xf]
        %v299 = vld [vmem:[#allocation5 + $0x20] sm:$0xf]
        %v300 = vld [vmem:[#allocation5 + $0x24] sm:$0xf]
        %v301 = vld [vmem:[#allocation5 + $0x28] sm:$0xf]
        %v302 = vld [vmem:[#allocation5 + $0x2c] sm:$0xf]
        %v303 = vld [vmem:[#allocation5 + $0x30] sm:$0xf]
        %v304 = vld [vmem:[#allocation5 + $0x34] sm:$0xf]
        %v305 = vld [vmem:[#allocation5 + $0x38] sm:$0xf]
        %v306 = vld [vmem:[#allocation5 + $0x3c] sm:$0xf]
        %v307 = vld [vmem:[#allocation5 + $0x40] sm:$0xf]
        %v308 = vld [vmem:[#allocation5 + $0x44] sm:$0xf]
        %v309 = vld [vmem:[#allocation5 + $0x48] sm:$0xf]
        %v310 = vld [vmem:[#allocation5 + $0x4c] sm:$0xf]
        %v311 = vld [vmem:[#allocation5 + $0x50] sm:$0xf]
        %v312 = vld [vmem:[#allocation5 + $0x54] sm:$0xf]
        %v313 = vld [vmem:[#allocation5 + $0x58] sm:$0xf]
        %v314 = vld [vmem:[#allocation5 + $0x5c] sm:$0xf]
        %v315 = vld [vmem:[#allocation5 + $0x60] sm:$0xf]
        %v316 = vld [vmem:[#allocation5 + $0x64] sm:$0xf]
        %v317 = vld [vmem:[#allocation5 + $0x68] sm:$0xf]
        %v318 = vld [vmem:[#allocation5 + $0x6c] sm:$0xf]
        %v319 = vld [vmem:[#allocation5 + $0x70] sm:$0xf]
        %v320 = vld [vmem:[#allocation5 + $0x74] sm:$0xf]
        %v321 = vld [vmem:[#allocation5 + $0x78] sm:$0xf]
        %v322 = vld [vmem:[#allocation5 + $0x7c] sm:$0xf]
        %v323 = vld [vmem:[#allocation5 + $0x80] sm:$0xf]
        %v324 = vld [vmem:[#allocation5 + $0x84] sm:$0xf]
        %v325 = vld [vmem:[#allocation5 + $0x88] sm:$0xf]
        %v326 = vld [vmem:[#allocation5 + $0x8c] sm:$0xf]
        %v327 = vld [vmem:[#allocation5 + $0x90] sm:$0xf]
        %v328 = vld [vmem:[#allocation5 + $0x94] sm:$0xf]
        %v329 = vld [vmem:[#allocation5 + $0x98] sm:$0xf]
        %v330 = vld [vmem:[#allocation5 + $0x9c] sm:$0xf]
        %v331 = vld [vmem:[#allocation5 + $0xa0] sm:$0xf]
        %v332 = vld [vmem:[#allocation5 + $0xa4] sm:$0xf]
        %v333 = vld [vmem:[#allocation5 + $0xa8] sm:$0xf]
        %v334 = vld [vmem:[#allocation5 + $0xac] sm:$0xf]
        %v335 = vld [vmem:[#allocation5 + $0xb0] sm:$0xf]
        %v336 = vld [vmem:[#allocation5 + $0xb4] sm:$0xf]
        %v337 = vld [vmem:[#allocation5 + $0xb8] sm:$0xf]
        %v338 = vld [vmem:[#allocation5 + $0xbc] sm:$0xf]
        %v339 = vld [vmem:[#allocation5 + $0xc0] sm:$0xf]
        %v340 = vld [vmem:[#allocation5 + $0xc4] sm:$0xf]
        %v341 = vld [vmem:[#allocation5 + $0xc8] sm:$0xf]
        %v342 = vld [vmem:[#allocation5 + $0xcc] sm:$0xf]
        %v343 = vld [vmem:[#allocation5 + $0xd0] sm:$0xf]
        %v344 = vld [vmem:[#allocation5 + $0xd4] sm:$0xf]
        %v345 = vld [vmem:[#allocation5 + $0xd8] sm:$0xf]
        %v346 = vld [vmem:[#allocation5 + $0xdc] sm:$0xf]
        %v347 = vld [vmem:[#allocation5 + $0xe0] sm:$0xf]
        %v348 = vld [vmem:[#allocation5 + $0xe4] sm:$0xf]
        %v349 = vld [vmem:[#allocation5 + $0xe8] sm:$0xf]
        %v350 = vld [vmem:[#allocation5 + $0xec] sm:$0xf]
        %v351 = vld [vmem:[#allocation5 + $0xf0] sm:$0xf]
        %v352 = vld [vmem:[#allocation5 + $0xf4] sm:$0xf]
        %v353 = vld [vmem:[#allocation5 + $0xf8] sm:$0xf]
        %v354 = vld [vmem:[#allocation5 + $0xfc] sm:$0xf]
        %v355 = vld [vmem:[%s2] sm:$0x1]
        %v356 = vunpack.c.l.bf16 %v287
        %v357 = vunpack.c.h.bf16 %v287
        %v358 = vunpack.c.l.bf16 %v288
        %v359 = vunpack.c.h.bf16 %v288
        %v360 = vunpack.c.l.bf16 %v289
        %v361 = vunpack.c.h.bf16 %v289
        %v362 = vunpack.c.l.bf16 %v290
        %v363 = vunpack.c.h.bf16 %v290
        %v364 = vmul.f32 %v356, %v356
        %v365 = vmul.f32 %v357, %v357
        %v366 = vmul.f32 %v358, %v358
        %v367 = vmul.f32 %v359, %v359
        %v368 = vmul.f32 %v360, %v360
        %v369 = vmul.f32 %v361, %v361
        %v370 = vmul.f32 %v362, %v362
        %v371 = vmul.f32 %v363, %v363
        %v372 = vadd.f32 %v364, %v365
        %v373 = vadd.f32 %v372, %v366
        %v374 = vadd.f32 %v373, %v367
        %375 = vadd.xlane.f32.xlu0 %v374
        %v376 = vpop.xlane.xlu0 %375
        %v377 = vadd.f32 %v368, %v369
        %v378 = vadd.f32 %v377, %v370
        %v379 = vadd.f32 %v378, %v371
        %380 = vadd.xlane.f32.xlu0 %v379
        %v381 = vpop.xlane.xlu0 %380
        %v386 = vunpack.c.l.b16 %v287
        %v387 = vunpack.c.h.b16 %v287
        %v388 = vunpack.c.l.b16 %v288
        %v389 = vunpack.c.h.b16 %v288
        %v390 = vunpack.c.l.b16 %v289
        %v391 = vunpack.c.h.b16 %v289
        %v392 = vunpack.c.l.b16 %v290
        %v393 = vunpack.c.h.b16 %v290
        %v394 = vpack.c.b16 %v390, %v386
        %v395 = vpack.c.b16 %v391, %v387
        %v396 = vpack.c.b16 %v392, %v388
        %v397 = vpack.c.b16 %v393, %v389
        %v466 = vunpack.c.l.b16 %v291
        %v467 = vunpack.c.l.b16 %v292
        %v468 = vunpack.c.l.b16 %v293
        %v469 = vunpack.c.l.b16 %v294
        %v470 = vunpack.c.l.b16 %v295
        %v471 = vunpack.c.l.b16 %v296
        %v472 = vunpack.c.l.b16 %v297
        %v473 = vunpack.c.l.b16 %v298
        %v474 = vunpack.c.l.b16 %v299
        %v475 = vunpack.c.l.b16 %v300
        %v476 = vunpack.c.l.b16 %v301
        %v477 = vunpack.c.l.b16 %v302
        %v478 = vunpack.c.l.b16 %v303
        %v479 = vunpack.c.l.b16 %v304
        %v480 = vunpack.c.l.b16 %v305
        %v481 = vunpack.c.l.b16 %v306
        %v482 = vunpack.c.l.b16 %v307
        %v483 = vunpack.c.l.b16 %v308
        %v484 = vunpack.c.l.b16 %v309
        %v485 = vunpack.c.l.b16 %v310
        %v486 = vunpack.c.l.b16 %v311
        %v487 = vunpack.c.l.b16 %v312
        %v488 = vunpack.c.l.b16 %v313
        %v489 = vunpack.c.l.b16 %v314
        %v490 = vunpack.c.l.b16 %v315
        %v491 = vunpack.c.l.b16 %v316
        %v492 = vunpack.c.l.b16 %v317
        %v493 = vunpack.c.l.b16 %v318
        %v494 = vunpack.c.l.b16 %v319
        %v495 = vunpack.c.l.b16 %v320
        %v496 = vunpack.c.l.b16 %v321
        %v497 = vunpack.c.l.b16 %v322
        %v498 = vunpack.c.l.b16 %v323
        %v499 = vunpack.c.l.b16 %v324
        %v500 = vunpack.c.l.b16 %v325
        %v501 = vunpack.c.l.b16 %v326
        %v502 = vunpack.c.l.b16 %v327
        %v503 = vunpack.c.l.b16 %v328
        %v504 = vunpack.c.l.b16 %v329
        %v505 = vunpack.c.l.b16 %v330
        %v506 = vunpack.c.l.b16 %v331
        %v507 = vunpack.c.l.b16 %v332
        %v508 = vunpack.c.l.b16 %v333
        %v509 = vunpack.c.l.b16 %v334
        %v510 = vunpack.c.l.b16 %v335
        %v511 = vunpack.c.l.b16 %v336
        %v512 = vunpack.c.l.b16 %v337
        %v513 = vunpack.c.l.b16 %v338
        %v514 = vunpack.c.l.b16 %v339
        %v515 = vunpack.c.l.b16 %v340
        %v516 = vunpack.c.l.b16 %v341
        %v517 = vunpack.c.l.b16 %v342
        %v518 = vunpack.c.l.b16 %v343
        %v519 = vunpack.c.l.b16 %v344
        %v520 = vunpack.c.l.b16 %v345
        %v521 = vunpack.c.l.b16 %v346
        %v522 = vunpack.c.l.b16 %v347
        %v523 = vunpack.c.l.b16 %v348
        %v524 = vunpack.c.l.b16 %v349
        %v525 = vunpack.c.l.b16 %v350
        %v526 = vunpack.c.l.b16 %v351
        %v527 = vunpack.c.l.b16 %v352
        %v528 = vunpack.c.l.b16 %v353
        %v529 = vunpack.c.l.b16 %v354
        %v530 = vpack.c.b16 %v467, %v466
        %v531 = vpack.c.b16 %v469, %v468
        %v532 = vpack.c.b16 %v471, %v470
        %v533 = vpack.c.b16 %v473, %v472
        %v534 = vpack.c.b16 %v475, %v474
        %v535 = vpack.c.b16 %v477, %v476
        %v536 = vpack.c.b16 %v479, %v478
        %v537 = vpack.c.b16 %v481, %v480
        %v538 = vpack.c.b16 %v483, %v482
        %v539 = vpack.c.b16 %v485, %v484
        %v540 = vpack.c.b16 %v487, %v486
        %v541 = vpack.c.b16 %v489, %v488
        %v542 = vpack.c.b16 %v491, %v490
        %v543 = vpack.c.b16 %v493, %v492
        %v544 = vpack.c.b16 %v495, %v494
        %v545 = vpack.c.b16 %v497, %v496
        %v546 = vpack.c.b16 %v499, %v498
        %v547 = vpack.c.b16 %v501, %v500
        %v548 = vpack.c.b16 %v503, %v502
        %v549 = vpack.c.b16 %v505, %v504
        %v550 = vpack.c.b16 %v507, %v506
        %v551 = vpack.c.b16 %v509, %v508
        %v552 = vpack.c.b16 %v511, %v510
        %v553 = vpack.c.b16 %v513, %v512
        %v554 = vpack.c.b16 %v515, %v514
        %v555 = vpack.c.b16 %v517, %v516
        %v556 = vpack.c.b16 %v519, %v518
        %v557 = vpack.c.b16 %v521, %v520
        %v558 = vpack.c.b16 %v523, %v522
        %v559 = vpack.c.b16 %v525, %v524
        %v560 = vpack.c.b16 %v527, %v526
        %v561 = vpack.c.b16 %v529, %v528
        %594 = vmatprep.subr.bf16.mxu0 0
        %595 = vmatpush1.bf16.msra.mxu0 %v530
        %596 = vmatprep.subr.bf16.mxu0 0
        %597 = vmatpush1.bf16.msra.mxu0 %v531
        %598 = vmatprep.subr.bf16.mxu0 0
        %599 = vmatpush1.bf16.msra.mxu0 %v532
        %600 = vmatprep.subr.bf16.mxu0 0
        %601 = vmatpush1.bf16.msra.mxu0 %v533
        %602 = vmatprep.subr.bf16.mxu0 0
        %603 = vmatpush1.bf16.msra.mxu0 %v534
        %604 = vmatprep.subr.bf16.mxu0 0
        %605 = vmatpush1.bf16.msra.mxu0 %v535
        %606 = vmatprep.subr.bf16.mxu0 0
        %607 = vmatpush1.bf16.msra.mxu0 %v536
        %608 = vmatprep.subr.bf16.mxu0 0
        %609 = vmatpush1.bf16.msra.mxu0 %v537
        %610 = vmatprep.subr.bf16.mxu0 0
        %611 = vmatpush1.bf16.msra.mxu0 %v538
        %612 = vmatprep.subr.bf16.mxu0 0
        %613 = vmatpush1.bf16.msra.mxu0 %v539
        %614 = vmatprep.subr.bf16.mxu0 0
        %615 = vmatpush1.bf16.msra.mxu0 %v540
        %616 = vmatprep.subr.bf16.mxu0 0
        %617 = vmatpush1.bf16.msra.mxu0 %v541
        %618 = vmatprep.subr.bf16.mxu0 0
        %619 = vmatpush1.bf16.msra.mxu0 %v542
        %620 = vmatprep.subr.bf16.mxu0 0
        %621 = vmatpush1.bf16.msra.mxu0 %v543
        %622 = vmatprep.subr.bf16.mxu0 0
        %623 = vmatpush1.bf16.msra.mxu0 %v544
        %624 = vmatprep.subr.bf16.mxu0 0
        %625 = vmatpush1.bf16.msra.mxu0 %v545
        %626 = vmatprep.mubr.bf16.mxu0 %v395
        %627 = vmatmul.mubr.bf16.gmra.mrb[0].mxu0 %v394
        %v628 = vpop.f32.mrb[0].mxu0
        %v629 = vadd.f32 0.0, %v628
        %v630 = vpop.f32.mrb[0].mxu0
        %v631 = vpop.f32.mrb[0].mxu0
        %v632 = vadd.f32 0.0, %v631
        %v633 = vpop.f32.mrb[0].mxu0
        %634 = vdwg.mxu0
        %635 = vmatprep.subr.bf16.mxu0 0
        %636 = vmatpush1.bf16.msra.mxu0 %v546
        %637 = vmatprep.subr.bf16.mxu0 0
        %638 = vmatpush1.bf16.msra.mxu0 %v547
        %639 = vmatprep.subr.bf16.mxu0 0
        %640 = vmatpush1.bf16.msra.mxu0 %v548
        %641 = vmatprep.subr.bf16.mxu0 0
        %642 = vmatpush1.bf16.msra.mxu0 %v549
        %643 = vmatprep.subr.bf16.mxu0 0
        %644 = vmatpush1.bf16.msra.mxu0 %v550
        %645 = vmatprep.subr.bf16.mxu0 0
        %646 = vmatpush1.bf16.msra.mxu0 %v551
        %647 = vmatprep.subr.bf16.mxu0 0
        %648 = vmatpush1.bf16.msra.mxu0 %v552
        %649 = vmatprep.subr.bf16.mxu0 0
        %650 = vmatpush1.bf16.msra.mxu0 %v553
        %651 = vmatprep.subr.bf16.mxu0 0
        %652 = vmatpush1.bf16.msra.mxu0 %v554
        %653 = vmatprep.subr.bf16.mxu0 0
        %654 = vmatpush1.bf16.msra.mxu0 %v555
        %655 = vmatprep.subr.bf16.mxu0 0
        %656 = vmatpush1.bf16.msra.mxu0 %v556
        %657 = vmatprep.subr.bf16.mxu0 0
        %658 = vmatpush1.bf16.msra.mxu0 %v557
        %659 = vmatprep.subr.bf16.mxu0 0
        %660 = vmatpush1.bf16.msra.mxu0 %v558
        %661 = vmatprep.subr.bf16.mxu0 0
        %662 = vmatpush1.bf16.msra.mxu0 %v559
        %663 = vmatprep.subr.bf16.mxu0 0
        %664 = vmatpush1.bf16.msra.mxu0 %v560
        %665 = vmatprep.subr.bf16.mxu0 0
        %666 = vmatpush1.bf16.msra.mxu0 %v561
        %667 = vmatprep.mubr.bf16.mxu0 %v397
        %668 = vmatmul.mubr.bf16.gmra.mrb[0].mxu0 %v396
        %v669 = vpop.f32.mrb[0].mxu0
        %v670 = vadd.f32 %v629, %v669
        %v671 = vpop.f32.mrb[0].mxu0
        %v672 = vpop.f32.mrb[0].mxu0
        %v673 = vadd.f32 %v632, %v672
        %v674 = vpop.f32.mrb[0].mxu0
        %675 = vdwg.mxu0
        %v676 = vmul.f32 %v670, 2.0
        %v677 = vmul.f32 %v673, 2.0
        %v678 = vsub.f32 %v376, %v676
        %v679 = vsub.f32 %v381, %v677
        %v681 = vlaneseq
        %v682 = vshrl.u32 %v681, 7
        %v683 = vsub.s32 0, %v682
        %v684 = vrot.slane %v355, %v683
        %v686 = vadd.f32 %v678, %v684
        %v687 = vadd.f32 %v679, %v684
        %v688 = vmax.f32 %v686, 0.0
        %v689 = vmax.f32 %v687, 0.0
        %v690 = vrsqrt.pop %v688
        %v691 = vmul.f32 %v688, %v690
        %vm692 = vcmp.eq.f32.partialorder %v688, inf
        %v693 = vsel %vm692, %v688, %v691
        %vm694 = vcmp.eq.f32.partialorder %v688, 0.0
        %v695 = vand.u32 %v688, 2147483648
        %v696 = vsel %vm694, %v695, %v693
        %v697 = vrsqrt.pop %v689
        %v698 = vmul.f32 %v689, %v697
        %vm699 = vcmp.eq.f32.partialorder %v689, inf
        %v700 = vsel %vm699, %v689, %v698
        %vm701 = vcmp.eq.f32.partialorder %v689, 0.0
        %v702 = vand.u32 %v689, 2147483648
        %v703 = vsel %vm701, %v702, %v700
        %v704 = vld [vmem:[%s280] sm:$0xff]
        %v705 = vld [vmem:[%s280 + $0x8] sm:$0xff]
        %v706 = vlaneseq
        %v707 = vand.u32 %v706, 127
        %s708 = smul.u32 %s22, 16
        %v709 = vlaneseq
        %v710 = vshrl.u32 %v709, 7
        %v711 = vadd.s32 %v710, 8
        %v712 = vstv %s708
        %v713 = vadd.s32 %v712, %v710
        %v714 = vadd.s32 %v712, %v711
        %vm715 = vcmp.lt.s32.totalorder %v713, 20
        %vm716 = vcmp.lt.s32.totalorder %v714, 20
        %717 = vset.pattern.permute.xlu0 0
        %718 = vperm.xlu0 %717, %v704
        %v719 = vpop.permute.xlu0 %718
        %720 = vset.pattern.permute.xlu0 0
        %721 = vperm.xlu0 %720, %v705
        %v722 = vpop.permute.xlu0 %721
        %vm723 = vcmp.eq.s32.totalorder %v707, %v719
        %vm724 = vcmp.eq.s32.totalorder %v707, %v722
        %v725 = vsel %vm723, %v696, 0.0
        %v726 = vsel %vm724, %v703, 0.0
        %727 = vadd.xlane.f32.xlu0 %v725
        %v728 = vpop.xlane.xlu0 %727
        %729 = vadd.xlane.f32.xlu0 %v726
        %v730 = vpop.xlane.xlu0 %729
        %vm731 = vcmp.lt.s32.totalorder %v704, 44
        %v732 = vsel %vm731, %v704, 44
        %vm733 = vcmp.lt.s32.totalorder %v705, 44
        %v734 = vsel %vm733, %v705, 44
        %vm735 = vcmp.lt.s32.totalorder %v707, 45
        %736 = vset.pattern.permute.xlu0 0
        %737 = vperm.xlu0 %736, %v732
        %v738 = vpop.permute.xlu0 %737
        %739 = vset.pattern.permute.xlu0 0
        %740 = vperm.xlu0 %739, %v734
        %v741 = vpop.permute.xlu0 %740
        %vm742 = vcmp.ne.s32.totalorder %v707, %v738
        %vm743 = vcmp.ne.s32.totalorder %v707, %v741
        %vm744 = vmand %vm735, %vm742
        %vm745 = vmand %vm735, %vm743
        %v746 = vsub.f32 0.0, %v696
        %v747 = vsub.f32 0.0, %v703
        %v748 = vmul.f32 %v746, 1.442695
        %v749 = vpow.pop %v748
        %v750 = vmul.f32 %v747, 1.442695
        %v751 = vpow.pop %v750
        %v752 = vsel %vm744, %v749, 0.0
        %v753 = vsel %vm745, %v751, 0.0
        %754 = vadd.xlane.f32.xlu0 %v752
        %v755 = vpop.xlane.xlu0 %754
        %756 = vadd.xlane.f32.xlu0 %v753
        %v757 = vpop.xlane.xlu0 %756
        %v758 = vlog2.pop %v755
        %v759 = vmul.f32 %v758, 0.6931472
        %v760 = vlog2.pop %v757
        %v761 = vmul.f32 %v760, 0.6931472
        %v762 = vadd.f32 %v728, %v759
        %v763 = vadd.f32 %v730, %v761
        %v764 = vsel %vm715, %v762, 0.0
        %v765 = vsel %vm716, %v763, 0.0
        %vm766 = vcmask 7168
        %v767 = vsel %vm766, %v764, 0.0
        %v768 = vsel %vm766, %v765, 0.0
        %v769 = vadd.f32 %v767, %v768
        %770 = vadd.xlane.f32.xlu0 %v769
        %v771 = vpop.xlane.xlu0 %770
        %v772 = vrot.slane %v771, 4
        %v773 = vadd.f32 %v771, %v772
        %v774 = vrot.slane %v773, 2
        %v775 = vadd.f32 %v773, %v774
        %v776 = vrot.slane %v775, 1
        %v777 = vadd.f32 %v775, %v776
        %s778 = vtos %v777
        %v779 = vstv %s778
        %780 = vst [vmem:[%s265] sm:$0x1] %v779
        %s781 = sand.u32 %s124, 1
        %s782 = scalar_lea.sflag [#allocation4], %s781
        %s783 = sand.u32 %s124, 1
        %s784 = scalar_lea.vmem [#allocation7], %s783
        // Predicated region
        $region45: #{tpu_custom_call.1} parent=35 // pred_check
          %p785 = pneg %p134
        $region46: #{tpu_custom_call.1} parent=35 // pred_check_branch
          %787 = sbr.rel (%p785) target = $region48
        $region47: #{tpu_custom_call.1} parent=35 // pred_region
          %s789 = ssub.s32 16, 16
          %790 = vsyncadd %s782, %s789
          %s791 = smul.addr %s22, 16
          %s792 = scalar_lea.hbm %s4, %s791
          %s794 = sshll.u32 %s784, 4
          %s795 = int_to_ptr.vmem [resolvable:$true] %s794
          %797 = dma.vmem_to_hbm [thread:$0]  %s795, 16, %s792, %s782
        $region48: #{tpu_custom_call.1} parent=35 // pred_fallthru
          _
      $region36: #{tpu_custom_call.1} parent=5 // pred_fallthru
        _
      %p798 = scmp.le.s32.totalorder 2, %s17
      // Predicated region
      $region49: #{tpu_custom_call.1} parent=5 // pred_check
        %p799 = pneg %p798
      $region50: #{tpu_custom_call.1} parent=5 // pred_check_branch
        %801 = sbr.rel (%p799) target = $region52
      $region51: #{tpu_custom_call.1} parent=5 // pred_region
        %s802 = ssub.s32 %s17, 2
        // Predicated region
        $region53: #{tpu_custom_call.1} parent=51 // pred_check
          %p803 = pneg %p140
        $region54: #{tpu_custom_call.1} parent=51 // pred_check_branch
          %805 = sbr.rel (%p803) target = $region56
        $region55: #{tpu_custom_call.1} parent=51 // pred_region
          %s806 = sand.u32 %s125, 1
          %s807 = scalar_lea.sflag [#allocation4], %s806
          %s808 = sand.u32 %s125, 1
          %s809 = scalar_lea.vmem [#allocation7], %s808
          %810 = dma.done %s807, 16
        $region56: #{tpu_custom_call.1} parent=51 // pred_fallthru
          _
      $region52: #{tpu_custom_call.1} parent=5 // pred_fallthru
        _
    $region6: #{tpu_custom_call.1} parent=1 // loop_footer
      %s21 = sadd.s32 1, %s17
    $region7: #{tpu_custom_call.1} parent=1 // loop_footer_branch
      %16 = sbr.rel target = $region3
    $region8: #{tpu_custom_call.1} parent=1 // loop_exit
      _
    %811 = vsyncpa [#allocation3], 1
    %s812 = scalar_lea.sflag [#allocation3], 1
    %813 = vsyncpa %s812, 1
    %814 = vsyncpa [#allocation6], 1
    %815 = vsyncpa [#allocation4], 1
    %s816 = scalar_lea.sflag [#allocation4], 1
    %817 = vsyncpa %s816, 1

</llo_original>
